<compile_context>
chip_gen: v5e
topology: v5e:2x2
jax: 0.10.0
libtpu: 0.0.40
codegen_flags: <defaults>
</compile_context>

<pallas_src>
import math
import random

import numpy as np
import jax
import jax.numpy as jnp
from jax.experimental import pallas as pl
from jax.experimental.pallas import tpu as pltpu


def _round_up(x, m):
    return ((x + m - 1) // m) * m


def _bucket_rows(b):
    """Pad batch rows to a shape-stable, (8,128)-friendly size."""
    bp = _round_up(max(b, 8), 8)
    if bp > 128:
        bp = _round_up(bp, 128)
    return bp


def _bucket_u(u):
    """Power-of-two bucket (>=128) for the data-dependent unique-node count."""
    return max(128, int(pl.next_power_of_2(max(u, 1))))


# ------------------------------- kernels -------------------------------------

def _mean_agg_kernel(mask_ref, emb_ref, inv_ref, out_ref):
    # Single K step (tk == Up): one MXU matmul, scale by the exact host-side
    # 1/num_neigh, one unmasked lane-dense store.  No scratch accumulator.
    out_ref[...] = (
        jnp.dot(mask_ref[...], emb_ref[...], preferred_element_type=jnp.float32)
        * inv_ref[...]                       # [tm,1] broadcasts over lanes
    ).astype(out_ref.dtype)


def _mean_agg_kernel_ksplit(mask_ref, emb_ref, inv_ref, out_ref):
    # Fallback for very large Up: accumulate directly into the resident f32
    # out_ref (same (i,j) block for every k) -- no extra VMEM scratch buffer.
    k = pl.program_id(2)

    @pl.when(k == 0)
    def _():
        out_ref[...] = jnp.zeros_like(out_ref)

    out_ref[...] += jnp.dot(
        mask_ref[...], emb_ref[...], preferred_element_type=jnp.float32
    )

    @pl.when(k == pl.num_programs(2) - 1)
    def _():
        out_ref[...] *= inv_ref[...]


# ------------------------------- wrapper --------------------------------------

def mean_aggregate(mask_p, inv_p, embed_matrix, tk_override=None):
    """mask_p: [Bp, Up] 0/1 membership (host-built, padded; bf16 or f32).
       inv_p : [Bp, 1]  f32 exact 1/num_neigh (padded rows clamped to 1.0).
       embed_matrix: fast path expects a pre-padded bf16 [Up, Dp] slab; any
                     other shape/dtype is cast+padded here (extra HBM pass --
                     avoid in production by having the features fn emit the
                     padded slab directly).
       Returns the padded lane-dense [Bp, Dp] f32 aggregated block."""
    Bp, Up = mask_p.shape

    emb = jnp.asarray(embed_matrix)
    if emb.ndim == 1:
        emb = emb[None, :]
    Ue, De = emb.shape
    Dp = _round_up(max(De, 128), 128)
    if emb.dtype != jnp.bfloat16 or De != Dp or Ue != Up:
        # Fallback prep path (one extra read+write pass over the slab).
        emb = jnp.pad(emb.astype(jnp.bfloat16), ((0, Up - Ue), (0, Dp - De)))

    mask_dev = jnp.asarray(mask_p, dtype=jnp.bfloat16)   # no-op if already bf16
    inv_dev = jnp.asarray(inv_p, dtype=jnp.float32)

    # ---- tile selection -------------------------------------------------------
    tm = Bp if Bp <= 128 else 128          # Bp is 8-mult (<=128) or 128-mult
    n_i = Bp // tm

    # Lane-dense output tiles; when the i axis has a single block, keep >= 2
    # blocks along D (when Dp allows) so both v7x TensorCores get work.
    if n_i == 1 and Dp >= 256:
        tn = 256 if (Dp % 256 == 0 and Dp // 256 >= 2) else 128
    else:
        tn = next(c for c in (512, 256, 128) if Dp % c == 0)

    # K tile: whole reduction in one step unless Up is huge (Up is a power of
    # two >= 128, so 4096 always divides it when it is larger).
    tk = Up
    if tk_override is not None:
        tk = tk_override
    elif Up > 4096 and Up % 4096 == 0:
        tk = 4096
    n_k = Up // tk

    out_shape = jax.ShapeDtypeStruct((Bp, Dp), jnp.float32)

    if n_k == 1:
        out_p = pl.pallas_call(
            _mean_agg_kernel,
            out_shape=out_shape,
            grid_spec=pltpu.PrefetchScalarGridSpec(
                num_scalar_prefetch=0,
                grid=(Bp // tm, Dp // tn),
                in_specs=[
                    pl.BlockSpec((tm, tk), lambda i, j: (i, 0)),   # mask
                    pl.BlockSpec((tk, tn), lambda i, j: (0, j)),   # embeddings
                    pl.BlockSpec((tm, 1), lambda i, j: (i, 0)),    # 1/num_neigh
                ],
                out_specs=pl.BlockSpec((tm, tn), lambda i, j: (i, j)),
            ),
            compiler_params=pltpu.CompilerParams(
                dimension_semantics=("parallel", "parallel")),
        )(mask_dev, emb, inv_dev)
    else:
        out_p = pl.pallas_call(
            _mean_agg_kernel_ksplit,
            out_shape=out_shape,
            grid_spec=pltpu.PrefetchScalarGridSpec(
                num_scalar_prefetch=0,
                grid=(Bp // tm, Dp // tn, n_k),
                in_specs=[
                    pl.BlockSpec((tm, tk), lambda i, j, k: (i, k)),
                    pl.BlockSpec((tk, tn), lambda i, j, k: (k, j)),
                    pl.BlockSpec((tm, 1), lambda i, j, k: (i, 0)),
                ],
                out_specs=pl.BlockSpec((tm, tn), lambda i, j, k: (i, j)),
            ),
            compiler_params=pltpu.CompilerParams(
                dimension_semantics=("parallel", "parallel", "arbitrary")),
        )(mask_dev, emb, inv_dev)

    return out_p


class MeanAggregator:
    """JAX/Pallas port of the PyTorch MeanAggregator.

    features(node_list, mode) -> [len(node_list), embed_dim or Dp] embeddings.
    Fast path: keep the embedding table persistent in bf16 with the feature
    dim pre-padded to a 128-multiple and supply `pad_node` (an id whose row is
    all zeros); then the gather inside `features` emits exactly the slab the
    kernel consumes and no device-side cast/pad runs before the kernel.
    """

    def __init__(self, features, pad_node=None, embed_dim=None):
        self.features = features
        self.pad_node = pad_node
        self.embed_dim = embed_dim

    def forward(self, to_neighs, rel, keep_prob=0.5, max_keep=10):
        # ---- host-side neighbor sampling + mask construction (matches torch) ----
        samp_neighs = [
            set(random.sample(
                sorted(to_neigh),
                min(int(math.ceil(len(to_neigh) * keep_prob)), max_keep)))
            for to_neigh in to_neighs
        ]
        unique_nodes_list = list(set.union(*samp_neighs))
        unique_nodes = {n: i for i, n in enumerate(unique_nodes_list)}

        B = len(samp_neighs)
        U = len(unique_nodes_list)

        # shape-stable padded buffers (cached pallas executables across calls)
        Bp = _bucket_rows(B)
        Up = _bucket_u(U)

        # padded 0/1 mask built on the host, shipped as bf16 (exact for 0/1)
        mask_p = np.zeros((Bp, Up), dtype=np.float32)
        column_indices = [unique_nodes[n] for sn in samp_neighs for n in sn]
        row_indices = [i for i in range(B) for _ in range(len(samp_neighs[i]))]
        mask_p[row_indices, column_indices] = 1.0
        mask_p = mask_p.astype(jnp.bfloat16)

        # exact 1/num_neigh on the host; zero-neighbor / padded rows clamp the
        # count to 1 (their mask rows are all-zero so the output is exactly 0).
        inv_p = np.ones((Bp, 1), dtype=np.float32)
        inv_p[:B, 0] = [1.0 / max(len(sn), 1) for sn in samp_neighs]

        # pad the node list to Up so the features fn's gather directly emits
        # the [Up, Dp] slab (pad columns are masked out, value irrelevant).
        pad_id = self.pad_node if self.pad_node is not None else (
            unique_nodes_list[0] if unique_nodes_list else 0)
        padded_nodes = unique_nodes_list + [pad_id] * (Up - U)
        embed_matrix = self.features(padded_nodes, rel[-1])

        out_p = mean_aggregate(mask_p, inv_p, embed_matrix)

        D_out = self.embed_dim
        if D_out is None:
            D_out = int(jnp.asarray(embed_matrix).shape[-1])

        # NOTE: downstream consumers that tolerate the padded lane-dense
        # [Bp, Dp] slab should take out_p directly and skip this slice.
        # TODO(synk): at production scale, batch multiple aggregator calls into
        # one pallas_call (M >= 256, tm=256 on v6e/v7x / 128 on v5e) and switch
        # the dense-mask matmul to a scalar-prefetched neighbor-index gather +
        # segment-mean (mask density is <= max_keep/Up).
        return out_p[:B, :D_out]

    __call__ = forward


if __name__ == "__main__":
    # deterministic setup
    random.seed(0)
    key = jax.random.PRNGKey(0)

    NUM_GLOBAL_NODES = 64
    EMBED_DIM = 32
    BATCH = 8

    # ---------------- direct kernel check #1 (single-K fast path) --------------
    Bt, Ut, Dt = 8, 70, 32
    rng = np.random.RandomState(1)
    mask_t = (rng.rand(Bt, Ut) < 0.2).astype(np.float32)
    mask_t[:, 0] = 1.0                       # every row has >= 1 neighbor
    counts_t = mask_t.sum(1, keepdims=True).astype(np.float32)

    Bp_t, Up_t = _bucket_rows(Bt), _bucket_u(Ut)
    Dp_t = _round_up(max(Dt, 128), 128)

    emb_f32 = np.asarray(jax.random.normal(jax.random.PRNGKey(1), (Ut, Dt), jnp.float32))
    emb_slab = np.zeros((Up_t, Dp_t), dtype=np.float32)
    emb_slab[:Ut, :Dt] = emb_f32
    emb_slab_bf16 = jnp.asarray(emb_slab, dtype=jnp.bfloat16)   # pre-padded bf16 slab

    mask_tp = np.zeros((Bp_t, Up_t), dtype=np.float32)
    mask_tp[:Bt, :Ut] = mask_t
    inv_tp = np.ones((Bp_t, 1), dtype=np.float32)
    inv_tp[:Bt] = 1.0 / counts_t

    got = np.asarray(jax.block_until_ready(
        mean_aggregate(mask_tp, inv_tp, emb_slab_bf16)))[:Bt, :Dt]
    emb_rounded = np.asarray(jnp.asarray(emb_slab_bf16, jnp.float32))[:Ut, :Dt]
    ref = (mask_t / counts_t) @ emb_rounded
    assert np.allclose(got, ref, rtol=1e-4, atol=1e-4), \
        f"single-K max abs err {np.max(np.abs(got - ref))}"

    # ---------------- direct kernel check #2 (K-split fallback path) -----------
    Bt2, Ut2, Dt2 = 8, 200, 32
    mask_t2 = (rng.rand(Bt2, Ut2) < 0.2).astype(np.float32)
    mask_t2[:, 0] = 1.0
    counts_t2 = mask_t2.sum(1, keepdims=True).astype(np.float32)
    Bp_t2, Up_t2 = _bucket_rows(Bt2), _bucket_u(Ut2)     # 8, 256
    emb_f32_2 = np.asarray(jax.random.normal(jax.random.PRNGKey(2), (Ut2, Dt2), jnp.float32))
    emb_slab2 = np.zeros((Up_t2, Dp_t), dtype=np.float32)
    emb_slab2[:Ut2, :Dt2] = emb_f32_2
    emb_slab2_bf16 = jnp.asarray(emb_slab2, dtype=jnp.bfloat16)

    mask_tp2 = np.zeros((Bp_t2, Up_t2), dtype=np.float32)
    mask_tp2[:Bt2, :Ut2] = mask_t2
    inv_tp2 = np.ones((Bp_t2, 1), dtype=np.float32)
    inv_tp2[:Bt2] = 1.0 / counts_t2

    got2 = np.asarray(jax.block_until_ready(
        mean_aggregate(mask_tp2, inv_tp2, emb_slab2_bf16, tk_override=128)))[:Bt2, :Dt2]
    emb_rounded2 = np.asarray(jnp.asarray(emb_slab2_bf16, jnp.float32))[:Ut2, :Dt2]
    ref2 = (mask_t2 / counts_t2) @ emb_rounded2
    assert np.allclose(got2, ref2, rtol=1e-4, atol=1e-4), \
        f"K-split max abs err {np.max(np.abs(got2 - ref2))}"

    # ---------------- end-to-end MeanAggregator forward ------------------------
    Dp = _round_up(max(EMBED_DIM, 128), 128)
    PAD_NODE = NUM_GLOBAL_NODES                      # index of the all-zero pad row

    # persistent bf16 embedding table: D pre-padded to Dp, extra zero pad row —
    # features_fn's gather emits exactly the kernel's bf16 slab (no device prep).
    table_f32 = jax.random.normal(key, (NUM_GLOBAL_NODES, EMBED_DIM), jnp.float32)
    table_bf16 = jnp.zeros((NUM_GLOBAL_NODES + 1, Dp), jnp.bfloat16)
    table_bf16 = table_bf16.at[:NUM_GLOBAL_NODES, :EMBED_DIM].set(
        table_f32.astype(jnp.bfloat16))

    def features_fn(node_list, mode):
        idx = jnp.asarray(np.asarray(node_list, dtype=np.int32))
        return table_bf16[idx]                       # [len(node_list), Dp] bf16

    nrng = np.random.RandomState(0)
    to_neighs = [
        set(nrng.choice(NUM_GLOBAL_NODES, size=nrng.randint(3, 12),
                        replace=False).tolist())
        for _ in range(BATCH)
    ]
    rel = ("drug", "psoriatic_arthritis", "drug")

    agg = MeanAggregator(features_fn, pad_node=PAD_NODE, embed_dim=EMBED_DIM)

    random.seed(0)
    to_feats = jax.block_until_ready(agg(to_neighs, rel, keep_prob=0.5, max_keep=10))
    assert to_feats.shape == (BATCH, EMBED_DIM)
    assert bool(jnp.all(jnp.isfinite(to_feats)))

    # reference: replay the sampling with the same RNG seed, compute in NumPy
    random.seed(0)
    samp_ref = [
        set(random.sample(sorted(tn_), min(int(math.ceil(len(tn_) * 0.5)), 10)))
        for tn_ in to_neighs
    ]
    uniq_ref = list(set.union(*samp_ref))
    uidx = {n: i for i, n in enumerate(uniq_ref)}
    mask_ref = np.zeros((BATCH, len(uniq_ref)), dtype=np.float32)
    for i, sn in enumerate(samp_ref):
        for n in sn:
            mask_ref[i, uidx[n]] = 1.0
    table_np = np.asarray(jnp.asarray(table_bf16, jnp.float32))
    emb_ref = table_np[np.asarray(uniq_ref, dtype=np.int32), :EMBED_DIM]
    expect = (mask_ref / mask_ref.sum(1, keepdims=True)) @ emb_ref
    assert np.allclose(np.asarray(to_feats), expect, rtol=1e-4, atol=1e-4), \
        f"e2e max abs err {np.max(np.abs(np.asarray(to_feats) - expect))}"

    print("KERNEL_OK")
</pallas_src>

<mosaic_0001>
module attributes {stable_mosaic.version = 11 : i64} {
  func.func @_mean_agg_kernel(%arg0: i32, %arg1: i32, %arg2: memref<8x128xbf16, #tpu.memory_space<vmem>>, %arg3: memref<128x128xbf16, #tpu.memory_space<vmem>>, %arg4: memref<8x1xf32, #tpu.memory_space<vmem>>, %arg5: memref<8x128xf32, #tpu.memory_space<vmem>>) attributes {dimension_semantics = [#tpu.dimension_semantics<parallel>, #tpu.dimension_semantics<parallel>], iteration_bounds = array<i64: 1, 1>, scalar_prefetch = 0 : i64, scratch_operands = 0 : i64, tpu.core_type = #tpu.core_type<tc>, window_params = [{transform_indices = @transform_0, window_bounds = array<i64: 8, 128>}, {transform_indices = @transform_1, window_bounds = array<i64: 128, 128>}, {transform_indices = @transform_2, window_bounds = array<i64: 8, 1>}, {transform_indices = @transform_3, window_bounds = array<i64: 8, 128>}]} {
    %c0 = arith.constant 0 : index
    %c0_0 = arith.constant 0 : index
    %0 = vector.load %arg2[%c0, %c0_0] : memref<8x128xbf16, #tpu.memory_space<vmem>>, vector<8x128xbf16>
    %c0_1 = arith.constant 0 : index
    %c0_2 = arith.constant 0 : index
    %1 = vector.load %arg3[%c0_1, %c0_2] : memref<128x128xbf16, #tpu.memory_space<vmem>>, vector<128x128xbf16>
    %cst = arith.constant dense<0.000000e+00> : vector<8x128xf32>
    %2 = tpu.matmul %0, %1, %cst {dimension_numbers = #tpu.dot_dimension_numbers<[1], [0], [0], [1], [0, 0, 1, 1], [], []>} : vector<8x128xbf16>, vector<128x128xbf16>, vector<8x128xf32> -> vector<8x128xf32>
    %c0_3 = arith.constant 0 : index
    %c0_4 = arith.constant 0 : index
    %3 = vector.load %arg4[%c0_3, %c0_4] : memref<8x1xf32, #tpu.memory_space<vmem>>, vector<8x1xf32>
    %4 = vector.broadcast %3 : vector<8x1xf32> to vector<8x128xf32>
    %5 = arith.mulf %2, %4 : vector<8x128xf32>
    %c0_5 = arith.constant 0 : index
    %c0_6 = arith.constant 0 : index
    %6 = vector.load %arg5[%c0_5, %c0_6] : memref<8x128xf32, #tpu.memory_space<vmem>>, vector<8x128xf32>
    tpu.vector_store %arg5[%c0_5, %c0_6], %5 {strides = array<i32>} : memref<8x128xf32, #tpu.memory_space<vmem>>, vector<8x128xf32>,
    return
  }
  func.func @transform_0(%arg0: i32, %arg1: i32) -> (i32, i32) {
    %c0_i32 = arith.constant 0 : i32
    %c0_i32_0 = arith.constant 0 : i32
    return %arg0, %c0_i32 : i32, i32
  }
  func.func @transform_1(%arg0: i32, %arg1: i32) -> (i32, i32) {
    %c0_i32 = arith.constant 0 : i32
    %c0_i32_0 = arith.constant 0 : i32
    return %c0_i32, %arg1 : i32, i32
  }
  func.func @transform_2(%arg0: i32, %arg1: i32) -> (i32, i32) {
    %c0_i32 = arith.constant 0 : i32
    %c0_i32_0 = arith.constant 0 : i32
    return %arg0, %c0_i32 : i32, i32
  }
  func.func @transform_3(%arg0: i32, %arg1: i32) -> (i32, i32) {
    %c0_i32 = arith.constant 0 : i32
    return %arg0, %arg1 : i32, i32
  }
}

</mosaic_0001>

<llo_original>
// kernel: tpu_custom_call.1
$region0: #{tpu_custom_call.1}
  #allocation0 [shape = 'u32[]', space=smem, size = 0x4, offset = 0x4, fixed_abs, tag = 'smem constant byte address 0x4 - core index']
  #allocation1 [shape = 'u32[72,128]{1,0:T(1,128)}', space=vmem, size = 0x9000, scoped, tag = 'internal scratch']
  %s0 = inlined_call_operand.vmem [shape: bf16[8,128], index: 0, kind: input, shape index: {}]
  %s1 = inlined_call_operand.hbm [shape: bf16[128,128], index: 1, kind: input, shape index: {}]
  %s2 = inlined_call_operand.vmem [shape: f32[8,1], index: 2, kind: input, shape index: {}]
  %s3 = inlined_call_operand.hbm [shape: f32[8,128], index: 3, kind: output, shape index: {}]
  %s4 = sld [smem:[#allocation0]]
  $region26: #{tpu_custom_call.1} parent=0
    _
  %s6 = ssub.s32 1, %s4
  %s7 = scalar_select 0, %s6, %s4
  $region1: #{tpu_custom_call.1} parent=0
    #allocation2 [shape = 'u8[32768]{0}', space=vmem, size = 0x8000, scoped, tag = 'input window, operand 1, single buffered']
    #allocation3 [shape = 's32[1]{0}', space=sflag, size = 0x4, scoped, tag = 'scoped memory for tpu_custom_call.1']
    #allocation4 [shape = 's32[1]{0}', space=sflag, size = 0x4, scoped, tag = 'scoped memory for tpu_custom_call.1']
    #allocation5 [shape = 'u8[4096]{0}', space=vmem, size = 0x1000, scoped, tag = 'output window, operand 0, single buffered']
    %8 = vsyncpa [#allocation3], 0
    %9 = vsyncpa [#allocation4], 0
    // Predicated region
    $region2: #{tpu_custom_call.1} parent=1 // pred_check
      _
    $region3: #{tpu_custom_call.1} parent=1 // pred_check_branch
      %11 = sbr.rel (0) target = $region5
    $region4: #{tpu_custom_call.1} parent=1 // pred_region
      _
    $region5: #{tpu_custom_call.1} parent=1 // pred_fallthru
      _
    // Predicated region
    $region6: #{tpu_custom_call.1} parent=1 // pred_check
      _
    $region7: #{tpu_custom_call.1} parent=1 // pred_check_branch
      %13 = sbr.rel (0) target = $region9
    $region8: #{tpu_custom_call.1} parent=1 // pred_region
      %15 = vsyncadd [#allocation3], 0
      %s16 = sshll.u32 %s1, 4
      %s17 = int_to_ptr.hbm [resolvable:$true] %s16
      %s18 = sshll.u32 [#allocation2], 4
      %s19 = int_to_ptr.vmem [resolvable:$true] %s18
      %24 = dma.hbm_to_vmem [thread:$0]  %s17, 1024, %s19, [#allocation3], 64, 64, 4
    $region9: #{tpu_custom_call.1} parent=1 // pred_fallthru
      _
    // Predicated region
    $region10: #{tpu_custom_call.1} parent=1 // pred_check
      _
    $region11: #{tpu_custom_call.1} parent=1 // pred_check_branch
      %26 = sbr.rel (0) target = $region13
    $region12: #{tpu_custom_call.1} parent=1 // pred_region
      _
    $region13: #{tpu_custom_call.1} parent=1 // pred_fallthru
      _
    // Predicated region
    $region14: #{tpu_custom_call.1} parent=1 // pred_check
      _
    $region15: #{tpu_custom_call.1} parent=1 // pred_check_branch
      %28 = sbr.rel (0) target = $region17
    $region16: #{tpu_custom_call.1} parent=1 // pred_region
      %30 = dma.done [#allocation3], 1024
    $region17: #{tpu_custom_call.1} parent=1 // pred_fallthru
      _
    %v31 = vld [vmem:[%s0] sm:$0xf]
    %v32 = vld [vmem:[#allocation2] sm:$0xf]
    %v33 = vld [vmem:[#allocation2 + $0x4] sm:$0xf]
    %v34 = vld [vmem:[#allocation2 + $0x8] sm:$0xf]
    %v35 = vld [vmem:[#allocation2 + $0xc] sm:$0xf]
    %v36 = vld [vmem:[#allocation2 + $0x10] sm:$0xf]
    %v37 = vld [vmem:[#allocation2 + $0x14] sm:$0xf]
    %v38 = vld [vmem:[#allocation2 + $0x18] sm:$0xf]
    %v39 = vld [vmem:[#allocation2 + $0x1c] sm:$0xf]
    %v40 = vld [vmem:[#allocation2 + $0x20] sm:$0xf]
    %v41 = vld [vmem:[#allocation2 + $0x24] sm:$0xf]
    %v42 = vld [vmem:[#allocation2 + $0x28] sm:$0xf]
    %v43 = vld [vmem:[#allocation2 + $0x2c] sm:$0xf]
    %v44 = vld [vmem:[#allocation2 + $0x30] sm:$0xf]
    %v45 = vld [vmem:[#allocation2 + $0x34] sm:$0xf]
    %v46 = vld [vmem:[#allocation2 + $0x38] sm:$0xf]
    %v47 = vld [vmem:[#allocation2 + $0x3c] sm:$0xf]
    %v64 = vunpack.c.l.b16 %v32
    %v65 = vunpack.c.l.b16 %v33
    %v66 = vunpack.c.l.b16 %v34
    %v67 = vunpack.c.l.b16 %v35
    %v68 = vunpack.c.l.b16 %v36
    %v69 = vunpack.c.l.b16 %v37
    %v70 = vunpack.c.l.b16 %v38
    %v71 = vunpack.c.l.b16 %v39
    %v72 = vunpack.c.l.b16 %v40
    %v73 = vunpack.c.l.b16 %v41
    %v74 = vunpack.c.l.b16 %v42
    %v75 = vunpack.c.l.b16 %v43
    %v76 = vunpack.c.l.b16 %v44
    %v77 = vunpack.c.l.b16 %v45
    %v78 = vunpack.c.l.b16 %v46
    %v79 = vunpack.c.l.b16 %v47
    %v80 = vpack.c.b16 %v65, %v64
    %v81 = vpack.c.b16 %v67, %v66
    %v82 = vpack.c.b16 %v69, %v68
    %v83 = vpack.c.b16 %v71, %v70
    %v84 = vpack.c.b16 %v73, %v72
    %v85 = vpack.c.b16 %v75, %v74
    %v86 = vpack.c.b16 %v77, %v76
    %v87 = vpack.c.b16 %v79, %v78
    %96 = vmatpush.bf16.msra.mxu0 %v87
    %97 = vmatpush.bf16.msra.mxu0 %v86
    %98 = vmatpush.bf16.msra.mxu0 %v85
    %99 = vmatpush.bf16.msra.mxu0 %v84
    %100 = vmatpush.bf16.msra.mxu0 %v83
    %101 = vmatpush.bf16.msra.mxu0 %v82
    %102 = vmatpush.bf16.msra.mxu0 %v81
    %103 = vmatpush.bf16.msra.mxu0 %v80
    %104 = vmatmul.bf16.gmra.mxu0 %v31
    %v105 = vpop.f32.mrf.mxu0
    %v106 = vadd.f32 0.0, %v105
    %v107 = vpop.f32.mrf.mxu0
    %108 = vdwg.mxu0
    %v109 = vld [vmem:[%s2] sm:$0xff]
    %111 = vset.pattern.permute.xlu0 0
    %112 = vperm.xlu0 %111, %v109
    %v113 = vpop.permute.xlu0 %112
    %v115 = vmul.f32 %v106, %v113
    %116 = vst [vmem:[#allocation5] sm:$0xff] %v115
    // Predicated region
    $region18: #{tpu_custom_call.1} parent=1 // pred_check
      _
    $region19: #{tpu_custom_call.1} parent=1 // pred_check_branch
      %118 = sbr.rel (0) target = $region21
    $region20: #{tpu_custom_call.1} parent=1 // pred_region
      %120 = vsyncadd [#allocation4], 0
      %s122 = sshll.u32 [#allocation5], 4
      %s123 = int_to_ptr.vmem [resolvable:$true] %s122
      %s124 = sshll.u32 %s3, 4
      %s125 = int_to_ptr.hbm [resolvable:$true] %s124
      %127 = dma.vmem_to_hbm [thread:$0]  %s123, 128, %s125, [#allocation4]
    $region21: #{tpu_custom_call.1} parent=1 // pred_fallthru
      _
    // Predicated region
    $region22: #{tpu_custom_call.1} parent=1 // pred_check
      _
    $region23: #{tpu_custom_call.1} parent=1 // pred_check_branch
      %129 = sbr.rel (0) target = $region25
    $region24: #{tpu_custom_call.1} parent=1 // pred_region
      %131 = dma.done [#allocation4], 128
    $region25: #{tpu_custom_call.1} parent=1 // pred_fallthru
      _
    %132 = vsyncpa [#allocation3], 1
    %133 = vsyncpa [#allocation4], 1

</llo_original>
